<compile_context>
chip_gen: v7x
topology: tpu7x:2x2x1
jax: 0.10.0
libtpu: 0.0.40
codegen_flags: <defaults>
</compile_context>

<pallas_src>
import math

import jax
import jax.numpy as jnp
from jax.experimental import pallas as pl
from jax.experimental.pallas import tpu as pltpu


def _round_up(x, m):
    return ((x + m - 1) // m) * m


def _cdiv(a, b):
    return (a + b - 1) // b


# -----------------------------------------------------------------------------
# Generation-dependent tile defaults and VMEM budget.
# -----------------------------------------------------------------------------
def _tpu_defaults():
    kind = ""
    try:
        kind = jax.devices()[0].device_kind.lower()
    except Exception:
        pass
    if "v7" in kind or "7x" in kind:
        # v7x: 64 MiB VMEM/TC -> 48 MiB cap; ~310 flops/byte needed, 512/1024 ~ 341.
        return 512, 1024, 48 << 20
    if "v6" in kind:
        # v6e: 128 MiB VMEM; ~650 flops/byte needed -> 1024/2048 ~ 683.
        return 1024, 2048, 96 << 20
    # v5e / unknown: 128 MiB VMEM; ~240 flops/byte needed -> 512/1024 is plenty.
    return 512, 1024, 96 << 20


def plan_k_tiling(K):
    """Pick (tk, Kp) with tk | Kp. Single-K fast path whenever K <= 4096.
    tk candidates are multiples of 256 (full 256x256 MXU passes on v6e/v7x)."""
    if K <= 4096:
        tk = _round_up(K, 128)
        return tk, tk
    candidates = (2048, 1536, 1024, 512)
    tk = min(candidates, key=lambda t: (_round_up(K, t) - K, -t))
    return tk, _round_up(K, tk)


# -----------------------------------------------------------------------------
# Kernels. Weight is (K, N)-major so the contraction is x[tm,tk] @ w[tk,tn].
# x is cast to the weight dtype inside the kernel (VPU cast, hidden under MXU).
# -----------------------------------------------------------------------------

def _linear_kernel_bias(x_ref, w_ref, b_ref, o_ref):
    x = x_ref[...].astype(w_ref.dtype)
    acc = jnp.dot(x, w_ref[...], preferred_element_type=jnp.float32)
    o_ref[...] = (acc + b_ref[...]).astype(o_ref.dtype)


def _linear_kernel_nobias(x_ref, w_ref, o_ref):
    x = x_ref[...].astype(w_ref.dtype)
    o_ref[...] = jnp.dot(
        x, w_ref[...], preferred_element_type=jnp.float32
    ).astype(o_ref.dtype)


def _linear_kernel_bias_kred(x_ref, w_ref, b_ref, o_ref, acc_ref):
    # grid = (M//tm, N//tn, Kp//tk); reduction axis (K) last.
    k = pl.program_id(2)

    @pl.when(k == 0)
    def _():
        acc_ref[...] = jnp.zeros_like(acc_ref)

    x = x_ref[...].astype(w_ref.dtype)
    acc_ref[...] += jnp.dot(x, w_ref[...], preferred_element_type=jnp.float32)

    @pl.when(k == pl.num_programs(2) - 1)
    def _():
        o_ref[...] = (acc_ref[...] + b_ref[...]).astype(o_ref.dtype)


def _linear_kernel_nobias_kred(x_ref, w_ref, o_ref, acc_ref):
    k = pl.program_id(2)

    @pl.when(k == 0)
    def _():
        acc_ref[...] = jnp.zeros_like(acc_ref)

    x = x_ref[...].astype(w_ref.dtype)
    acc_ref[...] += jnp.dot(x, w_ref[...], preferred_element_type=jnp.float32)

    @pl.when(k == pl.num_programs(2) - 1)
    def _():
        o_ref[...] = acc_ref[...].astype(o_ref.dtype)


# -----------------------------------------------------------------------------
# Wrapper: out[M, N] = x2d[M, K] @ weight_kn[:Kp, N] + bias
# -----------------------------------------------------------------------------

def column_parallel_linear_matmul(x2d, weight_kn, bias2d=None, *,
                                  out_dtype=None, tm=None, tn=None, tk=None):
    """`weight_kn` is (K, N) or already zero-padded along K to a multiple of tk
    (preferred: pad once at init). M/N are never padded — Pallas masks partial
    edge blocks. K is the only axis that must be zero-padded."""
    M, K = x2d.shape
    Kw, N = weight_kn.shape
    if out_dtype is None:
        out_dtype = x2d.dtype

    tm_d, tn_d, vmem_budget = _tpu_defaults()

    if tk is None:
        tk, Kp = plan_k_tiling(K)
    else:
        Kp = _round_up(K, tk)
    assert Kw in (K, Kp), "weight K dim must be K or K rounded up to tk multiple"

    # --- K zero-padding (garbage K columns would contaminate real outputs) ---
    if Kw != Kp:
        weight_kn = jnp.pad(weight_kn, ((0, Kp - Kw), (0, 0)))
    if Kp != K:
        x2d = jnp.pad(x2d, ((0, 0), (0, Kp - K)))

    single_k = (Kp == tk)

    # --- tile selection (bounded by problem size; bf16-friendly alignment) ---
    if tm is None:
        tm = min(tm_d, _round_up(M, 16))
    if tn is None:
        tn = min(tn_d, _round_up(N, 128))
        # Megacore (v7x: 2 TCs): guarantee >=2 blocks along a parallel axis
        # when the whole M fits in one tile (decode / small s*b shapes).
        if _cdiv(M, tm) == 1:
            while _cdiv(N, tn) < 2 and tn > 128:
                tn = max(128, _round_up(tn // 2, 128))

    has_bias = bias2d is not None

    xb = jnp.dtype(x2d.dtype).itemsize
    wb = jnp.dtype(weight_kn.dtype).itemsize
    ob = jnp.dtype(out_dtype).itemsize

    def footprint(tm_, tn_):
        f = 2 * tm_ * tk * xb + 2 * tk * tn_ * wb + 2 * tm_ * tn_ * ob
        if not single_k:
            f += tm_ * tn_ * 4
        if has_bias:
            f += 2 * tn_ * 4
        return f

    # Safety net: shrink M/N tiles to fit the generation's VMEM budget
    # (never tk — the weight's K padding is tied to it).
    while footprint(tm, tn) > vmem_budget and (tm > 16 or tn > 128):
        if tn >= tm and tn > 128:
            tn = max(128, _round_up(tn // 2, 128))
        elif tm > 16:
            tm = max(16, _round_up(tm // 2, 16))
        else:
            break

    vmem_limit = int(min(vmem_budget, max(32 << 20, footprint(tm, tn) * 3 // 2)))

    gm, gn, gk = _cdiv(M, tm), _cdiv(N, tn), Kp // tk

    cost = pl.CostEstimate(
        flops=2 * M * N * Kp,
        transcendentals=0,
        bytes_accessed=M * Kp * xb + Kp * N * wb + M * N * ob
        + (N * 4 if has_bias else 0),
    )

    if single_k:
        grid = (gm, gn)
        in_specs = [
            pl.BlockSpec((tm, tk), lambda i, j: (i, 0)),   # x
            pl.BlockSpec((tk, tn), lambda i, j: (0, j)),   # weight (K, N)
        ]
        if has_bias:
            in_specs.append(pl.BlockSpec((1, tn), lambda i, j: (0, j)))
        out_spec = pl.BlockSpec((tm, tn), lambda i, j: (i, j))
        kernel = _linear_kernel_bias if has_bias else _linear_kernel_nobias
        scratch = []
        dims = ("parallel", "parallel")
    else:
        grid = (gm, gn, gk)
        in_specs = [
            pl.BlockSpec((tm, tk), lambda i, j, k: (i, k)),   # x
            pl.BlockSpec((tk, tn), lambda i, j, k: (k, j)),   # weight (K, N)
        ]
        if has_bias:
            in_specs.append(pl.BlockSpec((1, tn), lambda i, j, k: (0, j)))
        out_spec = pl.BlockSpec((tm, tn), lambda i, j, k: (i, j))
        kernel = _linear_kernel_bias_kred if has_bias else _linear_kernel_nobias_kred
        scratch = [pltpu.VMEM((tm, tn), jnp.float32)]
        dims = ("parallel", "parallel", "arbitrary")

    args = (x2d, weight_kn, bias2d) if has_bias else (x2d, weight_kn)

    return pl.pallas_call(
        kernel,
        out_shape=jax.ShapeDtypeStruct((M, N), out_dtype),
        grid_spec=pltpu.PrefetchScalarGridSpec(
            num_scalar_prefetch=0,
            grid=grid,
            in_specs=in_specs,
            out_specs=out_spec,
            scratch_shapes=scratch,
        ),
        compiler_params=pltpu.CompilerParams(
            dimension_semantics=dims,
            vmem_limit_bytes=vmem_limit,
        ),
        cost_estimate=cost,
    )(*args)


class ColumnParallelLinearPallas:
    """JAX/Pallas equivalent of Megatron's ColumnParallelLinear forward
    (tensor-model-parallel world_size = 1: gather_output / copy-to-region are
    identities and output_size_per_partition == output_size)."""

    def __init__(self, input_size, output_size, key, bias=True,
                 gather_output=True, skip_bias_add=False,
                 params_dtype=jnp.float32, compute_dtype=jnp.bfloat16):
        self.input_size = input_size
        self.output_size = output_size
        self.gather_output = gather_output
        self.skip_bias_add = skip_bias_add
        self.compute_dtype = compute_dtype

        # xavier_normal_ on an (out, in) weight: std = sqrt(2/(fan_in+fan_out)).
        std = math.sqrt(2.0 / (input_size + output_size))
        wkey, _ = jax.random.split(key)
        # Megatron-layout master weight (out, in) — kept for API/reference parity.
        self.weight = (std * jax.random.normal(
            wkey, (output_size, input_size), dtype=jnp.float32)).astype(params_dtype)

        # Hoisted per-call work: (K, N)-major compute copy, cast ONCE to
        # compute_dtype and zero-padded along K ONCE to the Kp the kernel uses.
        # NOTE: bf16 operands (f32 accumulation) are an intentional numerics
        # change vs. Megatron's f32 matmul; pass compute_dtype=jnp.float32 for
        # f32-exact results.
        self.tk, self.kp = plan_k_tiling(input_size)
        w_kn = jnp.asarray(self.weight.T, dtype=compute_dtype)
        if self.kp != input_size:
            w_kn = jnp.pad(w_kn, ((0, self.kp - input_size), (0, 0)))
        self.weight_kn = w_kn

        # Megatron always zero-initializes the bias; keep an f32 (1, N) copy.
        self.bias = jnp.zeros((output_size,), dtype=params_dtype) if bias else None
        self.bias2d = (self.bias.astype(jnp.float32).reshape(1, output_size)
                       if bias else None)

    def __call__(self, input_):
        # input_: (s, b, h) — flattened to (s*b, h) like the async-allreduce path.
        s, b, h = input_.shape
        assert h == self.input_size
        x2d = input_.reshape(s * b, h)

        bias2d = None if self.skip_bias_add else self.bias2d
        out2d = column_parallel_linear_matmul(
            x2d, self.weight_kn, bias2d, out_dtype=input_.dtype, tk=self.tk)
        output = out2d.reshape(s, b, self.output_size)

        # gather_output with world_size == 1 is the identity.
        # TODO(synk): tensor-parallel all-gather and the PowerSGD / async
        #             all-reduce backward are not modeled (single partition,
        #             forward only).
        output_bias = self.bias if self.skip_bias_add else None
        return output, output_bias


if __name__ == "__main__":
    key = jax.random.PRNGKey(0)
    k_in, k_mod, k_in2, k_mod2 = jax.random.split(key, 4)

    # --- Test 1: aligned shapes, fused-bias kernel ---------------------------
    seq, batch, hidden, out_features = 8, 2, 128, 256
    x = jax.random.normal(k_in, (seq, batch, hidden), dtype=jnp.float32)

    layer = ColumnParallelLinearPallas(hidden, out_features, k_mod,
                                       bias=True, gather_output=True,
                                       skip_bias_add=False)
    out, out_bias = layer(x)
    out = jax.block_until_ready(out)

    # Reference: same bf16-cast operands, f32 accumulation (matches MXU numerics).
    x_bf = x.reshape(seq * batch, hidden).astype(jnp.bfloat16).astype(jnp.float32)
    w_bf = layer.weight.astype(jnp.bfloat16).astype(jnp.float32)
    ref = (x_bf @ w_bf.T + layer.bias).reshape(seq, batch, out_features)

    assert out.shape == (seq, batch, out_features)
    assert out_bias is None
    assert jnp.allclose(out, ref, atol=1e-3, rtol=1e-3), \
        float(jnp.max(jnp.abs(out - ref)))

    # --- Test 2: unaligned M/N/K (masked partial blocks + K zero-padding) and
    #             the no-bias kernel variant (skip_bias_add=True) -------------
    seq2, batch2, hidden2, out2_features = 5, 2, 96, 200
    x2 = jax.random.normal(k_in2, (seq2, batch2, hidden2), dtype=jnp.float32)
    layer2 = ColumnParallelLinearPallas(hidden2, out2_features, k_mod2,
                                        bias=True, gather_output=True,
                                        skip_bias_add=True)
    out2, out_bias2 = layer2(x2)
    out2 = jax.block_until_ready(out2)

    x2_bf = x2.reshape(seq2 * batch2, hidden2).astype(jnp.bfloat16).astype(jnp.float32)
    w2_bf = layer2.weight.astype(jnp.bfloat16).astype(jnp.float32)
    ref2 = (x2_bf @ w2_bf.T).reshape(seq2, batch2, out2_features)

    assert out2.shape == (seq2, batch2, out2_features)
    assert out_bias2 is not None
    assert jnp.allclose(out2, ref2, atol=1e-3, rtol=1e-3), \
        float(jnp.max(jnp.abs(out2 - ref2)))

    print("KERNEL_OK")
</pallas_src>

<mosaic_0001>
module attributes {stable_mosaic.version = 11 : i64} {
  func.func @_linear_kernel_bias(%arg0: i32, %arg1: i32, %arg2: memref<16x128xf32, #tpu.memory_space<vmem>>, %arg3: memref<128x128xbf16, #tpu.memory_space<vmem>>, %arg4: memref<1x128xf32, #tpu.memory_space<vmem>>, %arg5: memref<16x128xf32, #tpu.memory_space<vmem>>) attributes {dimension_semantics = [#tpu.dimension_semantics<parallel>, #tpu.dimension_semantics<parallel>], iteration_bounds = array<i64: 1, 2>, scalar_prefetch = 0 : i64, scratch_operands = 0 : i64, tpu.core_type = #tpu.core_type<tc>, window_params = [{transform_indices = @transform_0, window_bounds = array<i64: 16, 128>}, {transform_indices = @transform_1, window_bounds = array<i64: 128, 128>}, {transform_indices = @transform_2, window_bounds = array<i64: 1, 128>}, {transform_indices = @transform_3, window_bounds = array<i64: 16, 128>}]} {
    %c0 = arith.constant 0 : index
    %c0_0 = arith.constant 0 : index
    %0 = vector.load %arg2[%c0, %c0_0] : memref<16x128xf32, #tpu.memory_space<vmem>>, vector<16x128xf32>
    %1 = arith.truncf %0 : vector<16x128xf32> to vector<16x128xbf16>
    %c0_1 = arith.constant 0 : index
    %c0_2 = arith.constant 0 : index
    %2 = vector.load %arg3[%c0_1, %c0_2] : memref<128x128xbf16, #tpu.memory_space<vmem>>, vector<128x128xbf16>
    %cst = arith.constant dense<0.000000e+00> : vector<16x128xf32>
    %3 = tpu.matmul %1, %2, %cst {dimension_numbers = #tpu.dot_dimension_numbers<[1], [0], [0], [1], [0, 0, 1, 1], [], []>} : vector<16x128xbf16>, vector<128x128xbf16>, vector<16x128xf32> -> vector<16x128xf32>
    %c0_3 = arith.constant 0 : index
    %c0_4 = arith.constant 0 : index
    %4 = vector.load %arg4[%c0_3, %c0_4] : memref<1x128xf32, #tpu.memory_space<vmem>>, vector<1x128xf32>
    %5 = vector.broadcast %4 : vector<1x128xf32> to vector<16x128xf32>
    %6 = arith.addf %3, %5 : vector<16x128xf32>
    %c0_5 = arith.constant 0 : index
    %c0_6 = arith.constant 0 : index
    %7 = vector.load %arg5[%c0_5, %c0_6] : memref<16x128xf32, #tpu.memory_space<vmem>>, vector<16x128xf32>
    tpu.vector_store %arg5[%c0_5, %c0_6], %6 {strides = array<i32>} : memref<16x128xf32, #tpu.memory_space<vmem>>, vector<16x128xf32>,
    return
  }
  func.func @transform_0(%arg0: i32, %arg1: i32) -> (i32, i32) {
    %c0_i32 = arith.constant 0 : i32
    %c0_i32_0 = arith.constant 0 : i32
    return %arg0, %c0_i32 : i32, i32
  }
  func.func @transform_1(%arg0: i32, %arg1: i32) -> (i32, i32) {
    %c0_i32 = arith.constant 0 : i32
    %c0_i32_0 = arith.constant 0 : i32
    return %c0_i32, %arg1 : i32, i32
  }
  func.func @transform_2(%arg0: i32, %arg1: i32) -> (i32, i32) {
    %c0_i32 = arith.constant 0 : i32
    %c0_i32_0 = arith.constant 0 : i32
    return %c0_i32, %arg1 : i32, i32
  }
  func.func @transform_3(%arg0: i32, %arg1: i32) -> (i32, i32) {
    %c0_i32 = arith.constant 0 : i32
    return %arg0, %arg1 : i32, i32
  }
}

</mosaic_0001>

<llo_original>
// kernel: tpu_custom_call.1
$region0: #{tpu_custom_call.1}
  #allocation0 [shape = 'u32[]', space=smem, size = 0x4, offset = 0x4, fixed_abs, tag = 'smem constant byte address 0x4 - core index']
  #allocation1 [shape = 'u32[144,128]{1,0:T(1,128)}', space=vmem, size = 0x12000, scoped, tag = 'internal scratch']
  %s0 = inlined_call_operand.hbm [shape: f32[16,128], index: 0, kind: input, shape index: {}]
  %s1 = inlined_call_operand.hbm [shape: bf16[128,256], index: 1, kind: input, shape index: {}]
  %s2 = inlined_call_operand.vmem [shape: f32[1,256], index: 2, kind: input, shape index: {}]
  %s3 = inlined_call_operand.hbm [shape: f32[16,256], index: 3, kind: output, shape index: {}]
  %s4 = sld [smem:[#allocation0]]
  $region53: #{tpu_custom_call.1} parent=0
    _
  %s6 = ssub.s32 1, %s4
  %s7 = scalar_select 0, %s6, %s4
  $region1: #{tpu_custom_call.1} parent=0
    #allocation2 [shape = 'u8[8192]{0}', space=vmem, size = 0x2000, scoped, tag = 'input window, operand 0, single buffered']
    #allocation3 [shape = 's32[2]{0}', space=sflag, size = 0x8, scoped, tag = 'scoped memory for tpu_custom_call.1']
    #allocation4 [shape = 's32[2]{0}', space=sflag, size = 0x8, scoped, tag = 'scoped memory for tpu_custom_call.1']
    #allocation5 [shape = 'u8[65536]{0}', space=vmem, size = 0x10000, scoped, tag = 'input window, operand 1']
    #allocation6 [shape = 's32[2]{0}', space=sflag, size = 0x8, scoped, tag = 'scoped memory for tpu_custom_call.1']
    #allocation7 [shape = 'u8[16384]{0}', space=vmem, size = 0x4000, scoped, tag = 'output window, operand 0']
    %8 = vsyncpa [#allocation3], 0
    %9 = vsyncpa [#allocation6], 0
    %s10 = scalar_lea.sflag [#allocation6], 1
    %11 = vsyncpa %s10, 0
    %12 = vsyncpa [#allocation4], 0
    %s13 = scalar_lea.sflag [#allocation4], 1
    %14 = vsyncpa %s13, 0
    loop: start=0, step=1, limit=4
    $region2: #{tpu_custom_call.1} parent=1 // loop_pre_header
      _
    $region3: #{tpu_custom_call.1} parent=1 // loop_header
      %s16 = sphi 0, %s20
      %p17 = scmp.ge.s32.totalorder %s16, 4
      %s23 = sphi 0, %s35
      %s24 = sphi 0, %s31
      %s25 = sphi 0, %s23
      %s26 = sphi 0, %s24
      %s27 = sphi 0, %s25
      %s28 = sphi 0, %s26
      %s38 = sphi 0, %s40
      %s41 = sphi 0, %s38
      %s42 = sphi 0, %s41
      %s58 = sphi 0, %s42
      %s64 = sphi 0, %s66
      %s67 = sphi 0, %s64
      %s68 = sphi 0, %s67
      %s84 = sphi 0, %s68
      %s90 = sphi 0, %s92
      %s93 = sphi 0, %s90
      %s94 = sphi 0, %s93
      %s110 = sphi 0, %s94
      %s118 = sphi 0, %s120
      %s121 = sphi 0, %s118
      %s122 = sphi 0, %s121
      %s138 = sphi 0, %s122
    $region4: #{tpu_custom_call.1} parent=1 // loop_header_branch
      %19 = sbr.rel (%p17) target = $region8
    $region5: #{tpu_custom_call.1} parent=1 // loop_body
      %s21 = ssub.s32 %s16, 1
      %s22 = ssub.s32 %s16, 2
      %s29 = sadd.s32 1, %s24
      %p30 = scmp.ge.s32.totalorder %s29, 2
      %s31 = scalar_select %p30, 0, %s29
      %s32 = sadd.s32 1, %s23
      %s33 = scalar_select %p30, %s32, %s23
      %p34 = scmp.ge.s32.totalorder %s33, 1
      %s35 = scalar_select %p34, 0, %s33
      %s36 = ssub.s32 %s23, %s35
      %p37 = scmp.eq.s32.totalorder %s36, 0
      %s39 = sadd.s32 %s38, 1
      %s40 = scalar_select %p37, %s38, %s39
      %p43 = pneg %p37
      %p44 = scmp.eq.s32.totalorder %s16, 1
      %p45 = por %p43, %p44
      %p46 = scmp.ne.s32.totalorder %s38, %s41
      %p47 = scmp.eq.s32.totalorder %s16, 0
      %p48 = por %p46, %p47
      %p49 = scmp.ne.s32.totalorder %s38, %s41
      %p50 = scmp.eq.s32.totalorder %s21, 1
      %p51 = por %p49, %p50
      %p52 = scmp.ne.s32.totalorder %s41, %s42
      %p53 = scmp.eq.s32.totalorder %s21, 0
      %p54 = por %p52, %p53
      %p55 = scmp.ne.s32.totalorder %s41, %s42
      %p56 = scmp.eq.s32.totalorder %s22, 1
      %p57 = por %p55, %p56
      %p59 = scmp.ne.s32.totalorder %s42, %s58
      %p60 = scmp.eq.s32.totalorder %s22, 0
      %p61 = por %p59, %p60
      %s62 = ssub.s32 %s24, %s31
      %p63 = scmp.eq.s32.totalorder %s62, 0
      %s65 = sadd.s32 %s64, 1
      %s66 = scalar_select %p63, %s64, %s65
      %p69 = pneg %p63
      %p70 = scmp.eq.s32.totalorder %s16, 1
      %p71 = por %p69, %p70
      %p72 = scmp.ne.s32.totalorder %s64, %s67
      %p73 = scmp.eq.s32.totalorder %s16, 0
      %p74 = por %p72, %p73
      %p75 = scmp.ne.s32.totalorder %s64, %s67
      %p76 = scmp.eq.s32.totalorder %s21, 1
      %p77 = por %p75, %p76
      %p78 = scmp.ne.s32.totalorder %s67, %s68
      %p79 = scmp.eq.s32.totalorder %s21, 0
      %p80 = por %p78, %p79
      %p81 = scmp.ne.s32.totalorder %s67, %s68
      %p82 = scmp.eq.s32.totalorder %s22, 1
      %p83 = por %p81, %p82
      %p85 = scmp.ne.s32.totalorder %s68, %s84
      %p86 = scmp.eq.s32.totalorder %s22, 0
      %p87 = por %p85, %p86
      %s88 = ssub.s32 %s24, %s31
      %p89 = scmp.eq.s32.totalorder %s88, 0
      %s91 = sadd.s32 %s90, 1
      %s92 = scalar_select %p89, %s90, %s91
      %p95 = pneg %p89
      %p96 = scmp.eq.s32.totalorder %s16, 1
      %p97 = por %p95, %p96
      %p98 = scmp.ne.s32.totalorder %s90, %s93
      %p99 = scmp.eq.s32.totalorder %s16, 0
      %p100 = por %p98, %p99
      %p101 = scmp.ne.s32.totalorder %s90, %s93
      %p102 = scmp.eq.s32.totalorder %s21, 1
      %p103 = por %p101, %p102
      %p104 = scmp.ne.s32.totalorder %s93, %s94
      %p105 = scmp.eq.s32.totalorder %s21, 0
      %p106 = por %p104, %p105
      %p107 = scmp.ne.s32.totalorder %s93, %s94
      %p108 = scmp.eq.s32.totalorder %s22, 1
      %p109 = por %p107, %p108
      %p111 = scmp.ne.s32.totalorder %s94, %s110
      %p112 = scmp.eq.s32.totalorder %s22, 0
      %p113 = por %p111, %p112
      %s114 = ssub.s32 %s23, %s35
      %s115 = ssub.s32 %s24, %s31
      %s116 = sor.u32 %s114, %s115
      %p117 = scmp.eq.s32.totalorder %s116, 0
      %s119 = sadd.s32 %s118, 1
      %s120 = scalar_select %p117, %s118, %s119
      %p123 = pneg %p117
      %p124 = scmp.eq.s32.totalorder %s16, 1
      %p125 = por %p123, %p124
      %p126 = scmp.ne.s32.totalorder %s118, %s121
      %p127 = scmp.eq.s32.totalorder %s16, 0
      %p128 = por %p126, %p127
      %p129 = scmp.ne.s32.totalorder %s118, %s121
      %p130 = scmp.eq.s32.totalorder %s21, 1
      %p131 = por %p129, %p130
      %p132 = scmp.ne.s32.totalorder %s121, %s122
      %p133 = scmp.eq.s32.totalorder %s21, 0
      %p134 = por %p132, %p133
      %p135 = scmp.ne.s32.totalorder %s121, %s122
      %p136 = scmp.eq.s32.totalorder %s22, 1
      %p137 = por %p135, %p136
      %p139 = scmp.ne.s32.totalorder %s122, %s138
      %p140 = scmp.eq.s32.totalorder %s22, 0
      %p141 = por %p139, %p140
      %p142 = scmp.le.s32.totalorder 1, %s16
      %p143 = scmp.lt.s32.totalorder %s16, 3
      %p144 = pnand %p142, %p143
      %p145 = pneg %p144
      // Predicated region
      $region9: #{tpu_custom_call.1} parent=5 // pred_check
        _
      $region10: #{tpu_custom_call.1} parent=5 // pred_check_branch
        %147 = sbr.rel (%p144) target = $region12
      $region11: #{tpu_custom_call.1} parent=5 // pred_region
        %s148 = ssub.s32 %s16, 1
        // Predicated region
        $region13: #{tpu_custom_call.1} parent=11 // pred_check
          %p149 = pneg %p54
        $region14: #{tpu_custom_call.1} parent=11 // pred_check_branch
          %151 = sbr.rel (%p149) target = $region16
        $region15: #{tpu_custom_call.1} parent=11 // pred_region
          %s152 = smul.u32 2, %s25
          %s154 = ssub.s32 256, 256
          %155 = vsyncadd [#allocation3], %s154
          %s156 = smul.addr %s152, 128
          %s157 = scalar_lea.hbm %s0, %s156
          %s158 = sshll.u32 [#allocation2], 4
          %s159 = int_to_ptr.vmem [resolvable:$true] %s158
          %164 = dma.hbm_to_vmem [thread:$0]  %s157, 256, %s159, [#allocation3], 128, 128, 8
        $region16: #{tpu_custom_call.1} parent=11 // pred_fallthru
          _
      $region12: #{tpu_custom_call.1} parent=5 // pred_fallthru
        _
      %p165 = scmp.lt.s32.totalorder %s16, 2
      // Predicated region
      $region17: #{tpu_custom_call.1} parent=5 // pred_check
        %p166 = pneg %p165
      $region18: #{tpu_custom_call.1} parent=5 // pred_check_branch
        %168 = sbr.rel (%p166) target = $region20
      $region19: #{tpu_custom_call.1} parent=5 // pred_region
        // Predicated region
        $region21: #{tpu_custom_call.1} parent=19 // pred_check
          %p169 = pneg %p74
        $region22: #{tpu_custom_call.1} parent=19 // pred_check_branch
          %171 = sbr.rel (%p169) target = $region24
        $region23: #{tpu_custom_call.1} parent=19 // pred_region
          %s172 = sand.u32 %s64, 1
          %s173 = scalar_lea.sflag [#allocation6], %s172
          %s174 = sand.u32 %s64, 1
          %s175 = smul.addr %s174, 64
          %s176 = scalar_lea.vmem [#allocation5], %s175
          %s178 = ssub.s32 1024, 1024
          %179 = vsyncadd %s173, %s178
          %s180 = smul.addr %s24, 64
          %s181 = scalar_lea.hbm %s1, %s180
          %s182 = sshll.u32 %s176, 4
          %s183 = int_to_ptr.vmem [resolvable:$true] %s182
          %188 = dma.hbm_to_vmem [thread:$0]  %s181, 1024, %s183, %s173, 128, 64, 4
        $region24: #{tpu_custom_call.1} parent=19 // pred_fallthru
          _
        // Predicated region
        $region25: #{tpu_custom_call.1} parent=19 // pred_check
          %p189 = pneg %p100
        $region26: #{tpu_custom_call.1} parent=19 // pred_check_branch
          %191 = sbr.rel (%p189) target = $region28
        $region27: #{tpu_custom_call.1} parent=19 // pred_region
          %p192 = scmp.lt.s32.totalorder %s24, 1
          %s193 = scalar_select %p192, %s24, 1
          %s194 = scalar_lea.vmem %s2, %s193
        $region28: #{tpu_custom_call.1} parent=19 // pred_fallthru
          _
      $region20: #{tpu_custom_call.1} parent=5 // pred_fallthru
        _
      %p195 = scmp.le.s32.totalorder 1, %s16
      %p196 = scmp.lt.s32.totalorder %s16, 3
      %p197 = pnand %p195, %p196
      %p198 = pneg %p197
      // Predicated region
      $region29: #{tpu_custom_call.1} parent=5 // pred_check
        _
      $region30: #{tpu_custom_call.1} parent=5 // pred_check_branch
        %200 = sbr.rel (%p197) target = $region32
      $region31: #{tpu_custom_call.1} parent=5 // pred_region
        %s201 = ssub.s32 %s16, 1
        // Predicated region
        $region33: #{tpu_custom_call.1} parent=31 // pred_check
          %p202 = pneg %p54
        $region34: #{tpu_custom_call.1} parent=31 // pred_check_branch
          %204 = sbr.rel (%p202) target = $region36
        $region35: #{tpu_custom_call.1} parent=31 // pred_region
          %205 = dma.done [#allocation3], 256
        $region36: #{tpu_custom_call.1} parent=31 // pred_fallthru
          _
        %s206 = sand.u32 %s67, 1
        %s207 = scalar_lea.sflag [#allocation6], %s206
        %s208 = sand.u32 %s67, 1
        %s209 = smul.addr %s208, 64
        %s210 = scalar_lea.vmem [#allocation5], %s209
        // Predicated region
        $region37: #{tpu_custom_call.1} parent=31 // pred_check
          %p211 = pneg %p80
        $region38: #{tpu_custom_call.1} parent=31 // pred_check_branch
          %213 = sbr.rel (%p211) target = $region40
        $region39: #{tpu_custom_call.1} parent=31 // pred_region
          %214 = dma.done %s207, 1024
        $region40: #{tpu_custom_call.1} parent=31 // pred_fallthru
          _
        %p215 = pneg %p54
        %p216 = pneg %p51
        %s217 = sand.u32 %s67, 1
        %s218 = scalar_lea.sflag [#allocation6], %s217
        %s219 = sand.u32 %s67, 1
        %s220 = smul.addr %s219, 64
        %s221 = scalar_lea.vmem [#allocation5], %s220
        %p222 = pneg %p80
        %p223 = pneg %p77
        %p224 = scmp.lt.s32.totalorder %s26, 1
        %s225 = scalar_select %p224, %s26, 1
        %s226 = scalar_lea.vmem %s2, %s225
        %p227 = pneg %p106
        %p228 = pneg %p103
        %p229 = pneg %p134
        %p230 = pneg %p131
        %s231 = sand.u32 %s121, 1
        %s232 = scalar_lea.sflag [#allocation4], %s231
        %s233 = sand.u32 %s121, 1
        %s234 = smul.addr %s233, 16
        %s235 = scalar_lea.vmem [#allocation7], %s234
        %s236 = smul.u32 2, %s25
        %p237 = scmp.lt.s32.totalorder %s26, 1
        %s238 = scalar_select %p237, %s26, 1
        %s239 = scalar_lea.vmem %s2, %s238
        %s240 = smul.u32 2, %s25
        %v242 = vld [vmem:[#allocation2] sm:$0xff]
        %v243 = vld [vmem:[#allocation2 + $0x8] sm:$0xff]
        %v244 = vpack.c.bf16 %v243, %v242
        %v245 = vld [vmem:[%s210] sm:$0xf]
        %v246 = vld [vmem:[%s210 + $0x4] sm:$0xf]
        %v247 = vld [vmem:[%s210 + $0x8] sm:$0xf]
        %v248 = vld [vmem:[%s210 + $0xc] sm:$0xf]
        %v249 = vld [vmem:[%s210 + $0x10] sm:$0xf]
        %v250 = vld [vmem:[%s210 + $0x14] sm:$0xf]
        %v251 = vld [vmem:[%s210 + $0x18] sm:$0xf]
        %v252 = vld [vmem:[%s210 + $0x1c] sm:$0xf]
        %v253 = vld [vmem:[%s210 + $0x20] sm:$0xf]
        %v254 = vld [vmem:[%s210 + $0x24] sm:$0xf]
        %v255 = vld [vmem:[%s210 + $0x28] sm:$0xf]
        %v256 = vld [vmem:[%s210 + $0x2c] sm:$0xf]
        %v257 = vld [vmem:[%s210 + $0x30] sm:$0xf]
        %v258 = vld [vmem:[%s210 + $0x34] sm:$0xf]
        %v259 = vld [vmem:[%s210 + $0x38] sm:$0xf]
        %v260 = vld [vmem:[%s210 + $0x3c] sm:$0xf]
        %v261 = vld [vmem:[%s239] sm:$0x1]
        %v263 = vlaneseq
        %v264 = vshrl.u32 %v263, 7
        %v265 = vsub.s32 0, %v264
        %v266 = vrot.slane %v261, %v265
        %v284 = vunpack.c.l.b16 %v245
        %v285 = vunpack.c.l.b16 %v246
        %v286 = vunpack.c.l.b16 %v247
        %v287 = vunpack.c.l.b16 %v248
        %v288 = vunpack.c.l.b16 %v249
        %v289 = vunpack.c.l.b16 %v250
        %v290 = vunpack.c.l.b16 %v251
        %v291 = vunpack.c.l.b16 %v252
        %v292 = vunpack.c.l.b16 %v253
        %v293 = vunpack.c.l.b16 %v254
        %v294 = vunpack.c.l.b16 %v255
        %v295 = vunpack.c.l.b16 %v256
        %v296 = vunpack.c.l.b16 %v257
        %v297 = vunpack.c.l.b16 %v258
        %v298 = vunpack.c.l.b16 %v259
        %v299 = vunpack.c.l.b16 %v260
        %v300 = vpack.c.b16 %v285, %v284
        %v301 = vpack.c.b16 %v287, %v286
        %v302 = vpack.c.b16 %v289, %v288
        %v303 = vpack.c.b16 %v291, %v290
        %v304 = vpack.c.b16 %v293, %v292
        %v305 = vpack.c.b16 %v295, %v294
        %v306 = vpack.c.b16 %v297, %v296
        %v307 = vpack.c.b16 %v299, %v298
        %316 = vmatprep.subr.bf16.mxu0 0
        %317 = vmatpush1.bf16.msra.mxu0 %v300
        %318 = vmatprep.subr.bf16.mxu0 0
        %319 = vmatpush1.bf16.msra.mxu0 %v301
        %320 = vmatprep.subr.bf16.mxu0 0
        %321 = vmatpush1.bf16.msra.mxu0 %v302
        %322 = vmatprep.subr.bf16.mxu0 0
        %323 = vmatpush1.bf16.msra.mxu0 %v303
        %324 = vmatprep.subr.bf16.mxu0 0
        %325 = vmatpush1.bf16.msra.mxu0 %v304
        %326 = vmatprep.subr.bf16.mxu0 0
        %327 = vmatpush1.bf16.msra.mxu0 %v305
        %328 = vmatprep.subr.bf16.mxu0 0
        %329 = vmatpush1.bf16.msra.mxu0 %v306
        %330 = vmatprep.subr.bf16.mxu0 0
        %331 = vmatpush1.bf16.msra.mxu0 %v307
        %332 = vmatprep.subr.bf16.mxu0 0
        %333 = vmatpush1.bf16.msra.mxu0 0
        %334 = vmatprep.subr.bf16.mxu0 0
        %335 = vmatpush1.bf16.msra.mxu0 0
        %336 = vmatprep.subr.bf16.mxu0 0
        %337 = vmatpush1.bf16.msra.mxu0 0
        %338 = vmatprep.subr.bf16.mxu0 0
        %339 = vmatpush1.bf16.msra.mxu0 0
        %340 = vmatprep.subr.bf16.mxu0 0
        %341 = vmatpush1.bf16.msra.mxu0 0
        %342 = vmatprep.subr.bf16.mxu0 0
        %343 = vmatpush1.bf16.msra.mxu0 0
        %344 = vmatprep.subr.bf16.mxu0 0
        %345 = vmatpush1.bf16.msra.mxu0 0
        %346 = vmatprep.subr.bf16.mxu0 0
        %347 = vmatpush1.bf16.msra.mxu0 0
        %348 = vmatprep.mubr.bf16.mxu0 0
        %349 = vmatmul.mubr.bf16.gmra.mrb[0].mxu0 %v244
        %v350 = vpop.f32.mrb[0].mxu0
        %v351 = vadd.f32 %v266, %v350
        %v352 = vpop.f32.mrb[0].mxu0
        %v353 = vpop.f32.mrb[0].mxu0
        %v354 = vadd.f32 %v266, %v353
        %v355 = vpop.f32.mrb[0].mxu0
        %356 = vdwg.mxu0
        %357 = vst [vmem:[%s235] sm:$0xff] %v351
        %358 = vst [vmem:[%s235 + $0x8] sm:$0xff] %v354
        %s359 = sand.u32 %s121, 1
        %s360 = scalar_lea.sflag [#allocation4], %s359
        %s361 = sand.u32 %s121, 1
        %s362 = smul.addr %s361, 16
        %s363 = scalar_lea.vmem [#allocation7], %s362
        // Predicated region
        $region41: #{tpu_custom_call.1} parent=31 // pred_check
          %p364 = pneg %p131
        $region42: #{tpu_custom_call.1} parent=31 // pred_check_branch
          %366 = sbr.rel (%p364) target = $region44
        $region43: #{tpu_custom_call.1} parent=31 // pred_region
          %s367 = smul.u32 2, %s25
          %s369 = ssub.s32 256, 256
          %370 = vsyncadd %s360, %s369
          %s371 = smul.addr %s367, 2
          %s372 = sadd.s32 %s26, %s371
          %s373 = smul.addr %s372, 128
          %s374 = scalar_lea.hbm %s3, %s373
          %s375 = sshll.u32 %s363, 4
          %s376 = int_to_ptr.vmem [resolvable:$true] %s375
          %381 = dma.vmem_to_hbm [thread:$0]  %s376, 256, %s374, %s360, 128, 256, 8
        $region44: #{tpu_custom_call.1} parent=31 // pred_fallthru
          _
      $region32: #{tpu_custom_call.1} parent=5 // pred_fallthru
        _
      %p382 = scmp.le.s32.totalorder 2, %s16
      // Predicated region
      $region45: #{tpu_custom_call.1} parent=5 // pred_check
        %p383 = pneg %p382
      $region46: #{tpu_custom_call.1} parent=5 // pred_check_branch
        %385 = sbr.rel (%p383) target = $region48
      $region47: #{tpu_custom_call.1} parent=5 // pred_region
        %s386 = ssub.s32 %s16, 2
        // Predicated region
        $region49: #{tpu_custom_call.1} parent=47 // pred_check
          %p387 = pneg %p137
        $region50: #{tpu_custom_call.1} parent=47 // pred_check_branch
          %389 = sbr.rel (%p387) target = $region52
        $region51: #{tpu_custom_call.1} parent=47 // pred_region
          %s390 = sand.u32 %s122, 1
          %s391 = scalar_lea.sflag [#allocation4], %s390
          %s392 = sand.u32 %s122, 1
          %s393 = smul.addr %s392, 16
          %s394 = scalar_lea.vmem [#allocation7], %s393
          %395 = dma.done %s391, 256
        $region52: #{tpu_custom_call.1} parent=47 // pred_fallthru
          _
      $region48: #{tpu_custom_call.1} parent=5 // pred_fallthru
        _
    $region6: #{tpu_custom_call.1} parent=1 // loop_footer
      %s20 = sadd.s32 1, %s16
    $region7: #{tpu_custom_call.1} parent=1 // loop_footer_branch
      %15 = sbr.rel target = $region3
    $region8: #{tpu_custom_call.1} parent=1 // loop_exit
      _
    %396 = vsyncpa [#allocation3], 1
    %s397 = scalar_lea.sflag [#allocation3], 1
    %398 = vsyncpa %s397, 1
    %399 = vsyncpa [#allocation6], 1
    %s400 = scalar_lea.sflag [#allocation6], 1
    %401 = vsyncpa %s400, 1
    %402 = vsyncpa [#allocation4], 1
    %s403 = scalar_lea.sflag [#allocation4], 1
    %404 = vsyncpa %s403, 1

</llo_original>
